<compile_context>
chip_gen: v7x
topology: tpu7x:2x2x1
jax: 0.10.0
libtpu: 0.0.40
codegen_flags: <defaults>
</compile_context>

<pallas_src>
import functools

import jax
import jax.numpy as jnp
from jax.experimental import pallas as pl
from jax.experimental.pallas import tpu as pltpu

_VMEM_LIMIT = 64 * 1024 * 1024  # <= physical VMEM on v5e/v6e/v7x (re-derive per chip)


def _round_up(x, m):
    return (x + m - 1) // m * m


def _pick_batch_block(n, lk, target_rows=1024):
    """Prefer >=2 batch blocks (v7x megacore) while keeping bb*lk >= target_rows
    so the per-layer QKV/MLP matmuls hide the per-layer weight DMA."""
    divisors = [dv for dv in range(1, n + 1) if n % dv == 0]
    good = [dv for dv in divisors if dv < n and dv * lk >= target_rows]
    if good:
        return min(good)
    return n


# ----------------------------- Pallas kernels ------------------------------

def _layernorm(x, g, b, eps=1e-5):
    mu = jnp.mean(x, axis=-1, keepdims=True)
    var = jnp.mean((x - mu) ** 2, axis=-1, keepdims=True)
    return (x - mu) * jax.lax.rsqrt(var + eps) * g + b


def _patch_embed_kernel(p_ref, w_ref, bp_ref, o_ref):
    """[bb, L, P] (bf16) @ W [P, D] (bf16) + (bias+pos) -> [bb, L, D] (f32)."""
    pb, l, p = p_ref.shape
    d = w_ref.shape[1]
    y = jnp.dot(p_ref[...].reshape(pb * l, p), w_ref[...],
                preferred_element_type=jnp.float32)          # one MXU pass per block
    o_ref[...] = (y.reshape(pb, l, d) + bp_ref[...]).astype(o_ref.dtype)


def _encoder_kernel(x_ref, g1_ref, b1_ref, wqkv_ref, wo_ref, bo_ref,
                    g2_ref, b2_ref, w1_ref, c1_ref, w2_ref, c2_ref,
                    fg_ref, fb_ref, o_ref, *, num_heads, lk_valid):
    """One transformer block per grid step along axis 1 (layers).

    The f32 token tensor lives in o_ref (output block, constant block index
    along the layer axis -> resident in VMEM across all layers).  Final
    LayerNorm is fused into the last layer step.
    """
    layer = pl.program_id(1)
    n_layers = pl.num_programs(1)
    bb, lk, d = o_ref.shape
    dh = d // num_heads
    scale = dh ** -0.5
    bf16 = jnp.bfloat16

    # Load the running token tensor into the carry on the first layer.
    @pl.when(layer == 0)
    def _():
        o_ref[...] = x_ref[...]

    xf = o_ref[...].reshape(bb * lk, d)                        # (B*L, D), f32 residual

    g1 = g1_ref[0]; b1 = b1_ref[0]
    wqkv = wqkv_ref[0]
    wo = wo_ref[0]; bo = bo_ref[0]
    g2 = g2_ref[0]; b2 = b2_ref[0]
    w1 = w1_ref[0]; c1 = c1_ref[0]
    w2 = w2_ref[0]; c2 = c2_ref[0]

    # ---- MHSA: LN1 -> fused QKV matmul -> head-batched attention -> out proj
    h = _layernorm(xf, g1, b1)
    qkv = jnp.dot(h.astype(bf16), wqkv,
                  preferred_element_type=jnp.float32)          # (B*L, 3D), f32 acc

    def split_heads(t2):
        # (B*L, D) f32 -> (H*B, L, dh) bf16; heads folded into the leading axis
        # so attention runs as a single pair of batched 3-D einsums.
        t3 = t2.reshape(bb, lk, d).astype(bf16)
        return jnp.concatenate(
            [t3[:, :, hd * dh:(hd + 1) * dh] for hd in range(num_heads)], axis=0)

    q = split_heads(qkv[:, 0 * d:1 * d])
    k = split_heads(qkv[:, 1 * d:2 * d])
    v = split_heads(qkv[:, 2 * d:3 * d])

    s = jnp.einsum('nqd,nkd->nqk', q, k,
                   preferred_element_type=jnp.float32) * scale  # f32 scores
    if lk_valid < lk:  # mask padded key tokens (pad amount is compile-time static)
        key_mask = jax.lax.broadcasted_iota(jnp.int32, (1, 1, lk), 2) < lk_valid
        s = jnp.where(key_mask, s, -jnp.inf)
    p = jax.nn.softmax(s, axis=-1)                              # f32 softmax
    ctx_hb = jnp.einsum('nqk,nkd->nqd', p.astype(bf16), v,
                        preferred_element_type=jnp.float32)     # (H*B, L, dh)
    ctx = jnp.concatenate(
        [ctx_hb[hd * bb:(hd + 1) * bb] for hd in range(num_heads)], axis=-1
    ).reshape(bb * lk, d)                                       # back to (B*L, D)

    attn = jnp.dot(ctx.astype(bf16), wo, preferred_element_type=jnp.float32) + bo
    x1 = xf + attn                                              # f32 residual add

    # ---- MLP: LN2 -> Linear -> GELU(erf) -> Linear
    # TODO(synk): if VMEM is tight at scale (v7x), chunk w1/w2 over mlp_dim here.
    h2 = _layernorm(x1, g2, b2)
    m = jnp.dot(h2.astype(bf16), w1, preferred_element_type=jnp.float32) + c1
    m = jax.nn.gelu(m, approximate=False)   # exact erf-GELU for torch parity
    m = jnp.dot(m.astype(bf16), w2, preferred_element_type=jnp.float32) + c2
    y = x1 + m

    @pl.when(layer < n_layers - 1)
    def _():
        o_ref[...] = y.reshape(bb, lk, d).astype(o_ref.dtype)

    @pl.when(layer == n_layers - 1)                 # fused final LayerNorm
    def _():
        yn = _layernorm(y, fg_ref[...], fb_ref[...])
        o_ref[...] = yn.reshape(bb, lk, d).astype(o_ref.dtype)


# ------------------------------ model pieces -------------------------------

def init_params(key, *, in_channels, img_size, patch_size, hidden_size,
                mlp_dim, num_layers, num_heads):
    del num_heads
    ph, pw = patch_size
    gh, gw = img_size[0] // ph, img_size[1] // pw
    n_patches = gh * gw
    p = in_channels * ph * pw
    d, m, ly = hidden_size, mlp_dim, num_layers
    keys = jax.random.split(key, 6)

    def nrm(k, shape, dtype=jnp.bfloat16):
        # Matmul weights stored bf16: MXU-native operands, half the weight DMA
        # and half the double-buffered VMEM footprint per streamed layer.
        return (0.02 * jax.random.normal(k, shape, jnp.float32)).astype(dtype)

    # Per-layer weights are stacked with a leading layer axis so the encoder
    # can stream them with a grid over layers.
    return {
        "patch_w": nrm(keys[0], (p, d)),                 # flattened conv weight [C*ph*pw, D]
        "patch_b": jnp.zeros((1, d), jnp.float32),
        "pos": nrm(keys[1], (n_patches, d), jnp.float32),  # learnable position embedding
        "g1": jnp.ones((ly, 1, d), jnp.float32),
        "b1": jnp.zeros((ly, 1, d), jnp.float32),
        "wqkv": nrm(keys[2], (ly, d, 3 * d)),            # fused q|k|v projection (no bias)
        "wo": nrm(keys[3], (ly, d, d)),
        "bo": jnp.zeros((ly, 1, d), jnp.float32),
        "g2": jnp.ones((ly, 1, d), jnp.float32),
        "b2": jnp.zeros((ly, 1, d), jnp.float32),
        "w1": nrm(keys[4], (ly, d, m)),
        "c1": jnp.zeros((ly, 1, m), jnp.float32),
        "w2": nrm(keys[5], (ly, m, d)),
        "c2": jnp.zeros((ly, 1, d), jnp.float32),
        "final_g": jnp.ones((1, d), jnp.float32),
        "final_b": jnp.zeros((1, d), jnp.float32),
    }


def patch_embed(img, params, patch_size, batch_block=None):
    n, c, hh, ww = img.shape
    ph, pw = patch_size
    gh, gw = hh // ph, ww // pw
    l = gh * gw
    p = c * ph * pw
    d = params["patch_w"].shape[1]
    pb = n if batch_block is None else batch_block     # several images per grid step
    assert n % pb == 0
    # conv(kernel=stride=patch) == per-patch linear projection; cast patches to
    # bf16 (halves input DMA, MXU-native operand).
    patches = img.reshape(n, c, gh, ph, gw, pw).transpose(0, 2, 4, 1, 3, 5)
    patches = patches.reshape(n, l, p).astype(jnp.bfloat16)
    bias_pos = params["patch_b"] + params["pos"]       # hoisted once in the wrapper (L, D)
    return pl.pallas_call(
        _patch_embed_kernel,
        grid=(n // pb,),
        in_specs=[
            pl.BlockSpec((pb, l, p), lambda i: (i, 0, 0)),
            pl.BlockSpec((p, d), lambda i: (0, 0)),
            pl.BlockSpec((l, d), lambda i: (0, 0)),
        ],
        out_specs=pl.BlockSpec((pb, l, d), lambda i: (i, 0, 0)),
        out_shape=jax.ShapeDtypeStruct((n, l, d), jnp.float32),
        compiler_params=pltpu.CompilerParams(
            dimension_semantics=("parallel",),
            vmem_limit_bytes=_VMEM_LIMIT),
    )(patches, params["patch_w"], bias_pos)


def random_masking(x, mask_ratio, key):
    # TODO(synk): torch.rand/argsort/gather shuffle has no clean Pallas
    # equivalent; kept as plain-JAX glue between the two pallas_calls.
    n, l, d = x.shape
    len_keep = int(l * (1 - mask_ratio))
    noise = jax.random.uniform(key, (n, l))
    ids_shuffle = jnp.argsort(noise, axis=1)
    ids_restore = jnp.argsort(ids_shuffle, axis=1)
    ids_keep = ids_shuffle[:, :len_keep]
    x_masked = jnp.take_along_axis(
        x, jnp.broadcast_to(ids_keep[:, :, None], (n, len_keep, d)), axis=1)
    mask = jnp.ones((n, l), x.dtype).at[:, :len_keep].set(0.0)
    mask = jnp.take_along_axis(mask, ids_restore, axis=1)
    return x_masked, mask, ids_restore


def encoder_forward(x, params, *, num_heads, batch_block=None):
    """All transformer blocks + final LayerNorm in a single pallas_call."""
    n, lk_valid, d = x.shape
    ly = params["wqkv"].shape[0]
    m = params["w1"].shape[2]

    # Pad the kept-token count up to a sublane multiple (8; use 128 at scale)
    # so reshapes / MXU M dims stay tile-aligned; padded keys are masked in the
    # kernel's softmax and padded rows are sliced off below.
    lk = _round_up(lk_valid, 8)
    if lk != lk_valid:
        x = jnp.pad(x, ((0, 0), (0, lk - lk_valid), (0, 0)))

    bb = _pick_batch_block(n, lk) if batch_block is None else batch_block
    assert n % bb == 0
    grid = (n // bb, ly)                              # (batch blocks, layers)

    vec = lambda width: pl.BlockSpec((1, 1, width), lambda b, l: (l, 0, 0))
    weight_specs = [
        vec(d),                                                   # g1
        vec(d),                                                   # b1
        pl.BlockSpec((1, d, 3 * d), lambda b, l: (l, 0, 0)),      # wqkv (bf16, streamed)
        pl.BlockSpec((1, d, d), lambda b, l: (l, 0, 0)),          # wo
        vec(d),                                                   # bo
        vec(d),                                                   # g2
        vec(d),                                                   # b2
        pl.BlockSpec((1, d, m), lambda b, l: (l, 0, 0)),          # w1
        vec(m),                                                   # c1
        pl.BlockSpec((1, m, d), lambda b, l: (l, 0, 0)),          # w2
        vec(d),                                                   # c2
        pl.BlockSpec((1, d), lambda b, l: (0, 0)),                # final gamma
        pl.BlockSpec((1, d), lambda b, l: (0, 0)),                # final beta
    ]
    out_spec = pl.BlockSpec((bb, lk, d), lambda b, l: (b, 0, 0))  # carried across layers
    x_map = lambda b, l: (b, 0, 0)

    def _call(x_spec):
        return pl.pallas_call(
            functools.partial(_encoder_kernel, num_heads=num_heads,
                              lk_valid=lk_valid),
            grid=grid,
            in_specs=[x_spec] + weight_specs,
            out_specs=out_spec,
            out_shape=jax.ShapeDtypeStruct((n, lk, d), jnp.float32),
            compiler_params=pltpu.CompilerParams(
                dimension_semantics=("parallel", "arbitrary"),
                vmem_limit_bytes=_VMEM_LIMIT),
        )(x, params["g1"], params["b1"], params["wqkv"], params["wo"],
          params["bo"], params["g2"], params["b2"], params["w1"], params["c1"],
          params["w2"], params["c2"], params["final_g"], params["final_b"])

    try:
        # x is read only at layer 0 and its block index is constant along the
        # layer axis -> single-buffer it, reclaiming one (bb, lk, d) f32 buffer.
        out = _call(pl.BlockSpec((bb, lk, d), x_map, pipeline_mode=pl.Buffered(1)))
    except Exception:  # fall back for Pallas versions without single-buffering
        out = _call(pl.BlockSpec((bb, lk, d), x_map))

    return out[:, :lk_valid, :]


def mae_vit_encoder(img, mask_ratio, params, mask_key, *, patch_size, num_heads):
    x = patch_embed(img, params, patch_size)                      # [N, L, D]
    x, token_mask, ids_restore = random_masking(x, mask_ratio, mask_key)
    # classification=False -> no cls_token and no classification_head
    x = encoder_forward(x, params, num_heads=num_heads)           # blocks + final LN
    return x, token_mask, ids_restore


# ---------------------------------- main ------------------------------------

if __name__ == "__main__":
    N, C, H, W = 2, 4, 16, 16
    patch = (4, 4)                   # 16 patches
    hidden, mlp, layers, heads = 32, 64, 2, 4
    mask_ratio = 0.5                 # keep 8 of 16 tokens

    key = jax.random.PRNGKey(0)
    k_param, k_img, k_mask = jax.random.split(key, 3)

    params = init_params(k_param, in_channels=C, img_size=(H, W),
                         patch_size=patch, hidden_size=hidden, mlp_dim=mlp,
                         num_layers=layers, num_heads=heads)
    img = jax.random.normal(k_img, (N, C, H, W), jnp.float32)

    x, token_mask, ids_restore = mae_vit_encoder(
        img, mask_ratio, params, k_mask, patch_size=patch, num_heads=heads)
    jax.block_until_ready((x, token_mask, ids_restore))

    assert x.shape == (N, 8, hidden)
    assert token_mask.shape == (N, 16)
    assert ids_restore.shape == (N, 16)
    print("KERNEL_OK")
</pallas_src>

<mosaic_0001>
module attributes {stable_mosaic.version = 11 : i64} {
  func.func @_patch_embed_kernel(%arg0: i32, %arg1: memref<2x16x64xbf16, #tpu.memory_space<vmem>>, %arg2: memref<64x32xbf16, #tpu.memory_space<vmem>>, %arg3: memref<16x32xf32, #tpu.memory_space<vmem>>, %arg4: memref<2x16x32xf32, #tpu.memory_space<vmem>>) attributes {dimension_semantics = [#tpu.dimension_semantics<parallel>], iteration_bounds = array<i64: 1>, scalar_prefetch = 0 : i64, scratch_operands = 0 : i64, tpu.core_type = #tpu.core_type<tc>, window_params = [{transform_indices = @transform_0, window_bounds = array<i64: 2, 16, 64>}, {pipeline_mode = #tpu.pipeline_mode<synchronous>, transform_indices = @transform_1, window_bounds = array<i64: 64, 32>}, {pipeline_mode = #tpu.pipeline_mode<synchronous>, transform_indices = @transform_2, window_bounds = array<i64: 16, 32>}, {transform_indices = @transform_3, window_bounds = array<i64: 2, 16, 32>}]} {
    %c0 = arith.constant 0 : index
    %c0_0 = arith.constant 0 : index
    %c0_1 = arith.constant 0 : index
    %0 = vector.load %arg1[%c0, %c0_0, %c0_1] : memref<2x16x64xbf16, #tpu.memory_space<vmem>>, vector<2x16x64xbf16>
    %1 = vector.shape_cast %0 : vector<2x16x64xbf16> to vector<32x64xbf16>
    %c0_2 = arith.constant 0 : index
    %c0_3 = arith.constant 0 : index
    %2 = vector.load %arg2[%c0_2, %c0_3] : memref<64x32xbf16, #tpu.memory_space<vmem>>, vector<64x32xbf16>
    %cst = arith.constant dense<0.000000e+00> : vector<32x32xf32>
    %3 = tpu.matmul %1, %2, %cst {dimension_numbers = #tpu.dot_dimension_numbers<[1], [0], [0], [1], [0, 0, 1, 1], [], []>} : vector<32x64xbf16>, vector<64x32xbf16>, vector<32x32xf32> -> vector<32x32xf32>
    %4 = vector.shape_cast %3 : vector<32x32xf32> to vector<2x16x32xf32>
    %c0_4 = arith.constant 0 : index
    %c0_5 = arith.constant 0 : index
    %5 = vector.load %arg3[%c0_4, %c0_5] : memref<16x32xf32, #tpu.memory_space<vmem>>, vector<16x32xf32>
    %6 = vector.shape_cast %5 : vector<16x32xf32> to vector<1x16x32xf32>
    %7 = vector.broadcast %6 : vector<1x16x32xf32> to vector<2x16x32xf32>
    %8 = arith.addf %4, %7 : vector<2x16x32xf32>
    %c0_6 = arith.constant 0 : index
    %c0_7 = arith.constant 0 : index
    %c0_8 = arith.constant 0 : index
    %9 = vector.load %arg4[%c0_6, %c0_7, %c0_8] : memref<2x16x32xf32, #tpu.memory_space<vmem>>, vector<2x16x32xf32>
    tpu.vector_store %arg4[%c0_6, %c0_7, %c0_8], %8 {strides = array<i32>} : memref<2x16x32xf32, #tpu.memory_space<vmem>>, vector<2x16x32xf32>,
    return
  }
  func.func @transform_0(%arg0: i32) -> (i32, i32, i32) {
    %c0_i32 = arith.constant 0 : i32
    %c0_i32_0 = arith.constant 0 : i32
    %c0_i32_1 = arith.constant 0 : i32
    return %arg0, %c0_i32, %c0_i32_0 : i32, i32, i32
  }
  func.func @transform_1(%arg0: i32) -> (i32, i32) {
    %c0_i32 = arith.constant 0 : i32
    %c0_i32_0 = arith.constant 0 : i32
    %c0_i32_1 = arith.constant 0 : i32
    return %c0_i32, %c0_i32_0 : i32, i32
  }
  func.func @transform_2(%arg0: i32) -> (i32, i32) {
    %c0_i32 = arith.constant 0 : i32
    %c0_i32_0 = arith.constant 0 : i32
    %c0_i32_1 = arith.constant 0 : i32
    return %c0_i32, %c0_i32_0 : i32, i32
  }
  func.func @transform_3(%arg0: i32) -> (i32, i32, i32) {
    %c0_i32 = arith.constant 0 : i32
    %c0_i32_0 = arith.constant 0 : i32
    %c0_i32_1 = arith.constant 0 : i32
    return %arg0, %c0_i32, %c0_i32_0 : i32, i32, i32
  }
}

</mosaic_0001>

<llo_original>
// kernel: tpu_custom_call.1
$region0: #{tpu_custom_call.1}
  #allocation0 [shape = 'u32[]', space=smem, size = 0x4, offset = 0x4, fixed_abs, tag = 'smem constant byte address 0x4 - core index']
  #allocation1 [shape = 'u32[144,128]{1,0:T(1,128)}', space=vmem, size = 0x12000, scoped, tag = 'internal scratch']
  %s0 = inlined_call_operand.hbm [shape: bf16[2,16,64], index: 0, kind: input, shape index: {}]
  %s1 = inlined_call_operand.hbm [shape: bf16[64,32], index: 1, kind: input, shape index: {}]
  %s2 = inlined_call_operand.hbm [shape: f32[16,32], index: 2, kind: input, shape index: {}]
  %s3 = inlined_call_operand.hbm [shape: f32[2,16,32], index: 3, kind: output, shape index: {}]
  %s4 = sld [smem:[#allocation0]]
  $region34: #{tpu_custom_call.1} parent=0
    _
  %s6 = ssub.s32 1, %s4
  %s7 = scalar_select 0, %s6, %s4
  $region1: #{tpu_custom_call.1} parent=0
    #allocation2 [shape = 'u8[8192]{0}', space=vmem, size = 0x2000, scoped, tag = 'input window, operand 0, single buffered']
    #allocation3 [shape = 's32[1]{0}', space=sflag, size = 0x4, scoped, tag = 'scoped memory for tpu_custom_call.1']
    #allocation4 [shape = 's32[1]{0}', space=sflag, size = 0x4, scoped, tag = 'scoped memory for tpu_custom_call.1']
    #allocation5 [shape = 'u8[16384]{0}', space=vmem, size = 0x4000, scoped, tag = 'input window, operand 1, single buffered']
    #allocation6 [shape = 's32[1]{0}', space=sflag, size = 0x4, scoped, tag = 'scoped memory for tpu_custom_call.1']
    #allocation7 [shape = 'u8[8192]{0}', space=vmem, size = 0x2000, scoped, tag = 'input window, operand 2, single buffered']
    #allocation8 [shape = 'u8[16384]{0}', space=vmem, size = 0x4000, scoped, tag = 'output window, operand 0, single buffered']
    %8 = vsyncpa [#allocation3], 0
    %9 = vsyncpa [#allocation6], 0
    %10 = vsyncpa [#allocation4], 0
    // Predicated region
    $region2: #{tpu_custom_call.1} parent=1 // pred_check
      _
    $region3: #{tpu_custom_call.1} parent=1 // pred_check_branch
      %12 = sbr.rel (0) target = $region5
    $region4: #{tpu_custom_call.1} parent=1 // pred_region
      %s14 = ssub.s32 256, 256
      %15 = vsyncadd [#allocation3], %s14
      %s16 = sshll.u32 [#allocation2], 4
      %s17 = int_to_ptr.vmem [resolvable:$true] %s16
      %22 = dma.hbm_to_vmem [thread:$0]  %s0, 256, %s17, [#allocation3], 64, 64, 4
    $region5: #{tpu_custom_call.1} parent=1 // pred_fallthru
      _
    // Predicated region
    $region6: #{tpu_custom_call.1} parent=1 // pred_check
      _
    $region7: #{tpu_custom_call.1} parent=1 // pred_check_branch
      %24 = sbr.rel (0) target = $region9
    $region8: #{tpu_custom_call.1} parent=1 // pred_region
      %s26 = ssub.s32 512, 512
      %27 = vsyncadd [#allocation6], %s26
      %s28 = sshll.u32 [#allocation5], 4
      %s29 = int_to_ptr.vmem [resolvable:$true] %s28
      %34 = dma.hbm_to_vmem [thread:$0]  %s1, 512, %s29, [#allocation6], 64, 64, 4
    $region9: #{tpu_custom_call.1} parent=1 // pred_fallthru
      _
    // Predicated region
    $region10: #{tpu_custom_call.1} parent=1 // pred_check
      _
    $region11: #{tpu_custom_call.1} parent=1 // pred_check_branch
      %36 = sbr.rel (0) target = $region13
    $region12: #{tpu_custom_call.1} parent=1 // pred_region
      %s38 = ssub.s32 256, 256
      %39 = vsyncadd [#allocation6], %s38
      %s40 = sshll.u32 [#allocation7], 4
      %s41 = int_to_ptr.vmem [resolvable:$true] %s40
      %46 = dma.hbm_to_vmem [thread:$0]  %s2, 256, %s41, [#allocation6], 128, 128, 8
    $region13: #{tpu_custom_call.1} parent=1 // pred_fallthru
      _
    // Predicated region
    $region14: #{tpu_custom_call.1} parent=1 // pred_check
      _
    $region15: #{tpu_custom_call.1} parent=1 // pred_check_branch
      %48 = sbr.rel (0) target = $region17
    $region16: #{tpu_custom_call.1} parent=1 // pred_region
      %49 = dma.done [#allocation3], 256
    $region17: #{tpu_custom_call.1} parent=1 // pred_fallthru
      _
    // Predicated region
    $region18: #{tpu_custom_call.1} parent=1 // pred_check
      _
    $region19: #{tpu_custom_call.1} parent=1 // pred_check_branch
      %51 = sbr.rel (0) target = $region21
    $region20: #{tpu_custom_call.1} parent=1 // pred_region
      %52 = dma.done [#allocation6], 512
    $region21: #{tpu_custom_call.1} parent=1 // pred_fallthru
      _
    // Predicated region
    $region22: #{tpu_custom_call.1} parent=1 // pred_check
      _
    $region23: #{tpu_custom_call.1} parent=1 // pred_check_branch
      %54 = sbr.rel (0) target = $region25
    $region24: #{tpu_custom_call.1} parent=1 // pred_region
      %55 = dma.done [#allocation6], 256
    $region25: #{tpu_custom_call.1} parent=1 // pred_fallthru
      _
    %v57 = vld [vmem:[#allocation2] sm:$0xf]
    %v58 = vld [vmem:[#allocation2 + $0x4] sm:$0xf]
    %v59 = vld [vmem:[#allocation2 + $0x8] sm:$0xf]
    %v60 = vld [vmem:[#allocation2 + $0xc] sm:$0xf]
    %v61 = vld [vmem:[#allocation5] sm:$0xf]
    %v62 = vld [vmem:[#allocation5 + $0x4] sm:$0xf]
    %v63 = vld [vmem:[#allocation5 + $0x8] sm:$0xf]
    %v64 = vld [vmem:[#allocation5 + $0xc] sm:$0xf]
    %v65 = vld [vmem:[#allocation5 + $0x10] sm:$0xf]
    %v66 = vld [vmem:[#allocation5 + $0x14] sm:$0xf]
    %v67 = vld [vmem:[#allocation5 + $0x18] sm:$0xf]
    %v68 = vld [vmem:[#allocation5 + $0x1c] sm:$0xf]
    %v73 = vunpack.c.l.b16 %v57
    %v74 = vunpack.c.l.b16 %v58
    %v75 = vunpack.c.l.b16 %v59
    %v76 = vunpack.c.l.b16 %v60
    %v77 = vpack.c.b16 %v74, %v73
    %v78 = vpack.c.b16 %v76, %v75
    %v87 = vunpack.c.l.b16 %v61
    %v88 = vunpack.c.l.b16 %v62
    %v89 = vunpack.c.l.b16 %v63
    %v90 = vunpack.c.l.b16 %v64
    %v91 = vunpack.c.l.b16 %v65
    %v92 = vunpack.c.l.b16 %v66
    %v93 = vunpack.c.l.b16 %v67
    %v94 = vunpack.c.l.b16 %v68
    %v95 = vpack.c.b16 %v88, %v87
    %v96 = vpack.c.b16 %v90, %v89
    %v97 = vpack.c.b16 %v92, %v91
    %v98 = vpack.c.b16 %v94, %v93
    %vm103 = vcmask 523264
    %v105 = vsel %vm103, %v77, 0
    %v108 = vsel %vm103, %v78, 0
    %110 = vmatprep.subr.bf16.mxu0 0
    %111 = vmatpush1.bf16.msra.mxu0 %v95
    %112 = vmatprep.subr.bf16.mxu0 0
    %113 = vmatpush1.bf16.msra.mxu0 %v96
    %114 = vmatprep.subr.bf16.mxu0 0
    %115 = vmatpush1.bf16.msra.mxu0 %v97
    %116 = vmatprep.subr.bf16.mxu0 0
    %117 = vmatpush1.bf16.msra.mxu0 %v98
    %118 = vmatprep.subr.bf16.mxu0 0
    %119 = vmatpush1.bf16.msra.mxu0 0
    %120 = vmatprep.subr.bf16.mxu0 0
    %121 = vmatpush1.bf16.msra.mxu0 0
    %122 = vmatprep.subr.bf16.mxu0 0
    %123 = vmatpush1.bf16.msra.mxu0 0
    %124 = vmatprep.subr.bf16.mxu0 0
    %125 = vmatpush1.bf16.msra.mxu0 0
    %126 = vmatprep.subr.bf16.mxu0 0
    %127 = vmatpush1.bf16.msra.mxu0 0
    %128 = vmatprep.subr.bf16.mxu0 0
    %129 = vmatpush1.bf16.msra.mxu0 0
    %130 = vmatprep.subr.bf16.mxu0 0
    %131 = vmatpush1.bf16.msra.mxu0 0
    %132 = vmatprep.subr.bf16.mxu0 0
    %133 = vmatpush1.bf16.msra.mxu0 0
    %134 = vmatprep.subr.bf16.mxu0 0
    %135 = vmatpush1.bf16.msra.mxu0 0
    %136 = vmatprep.subr.bf16.mxu0 0
    %137 = vmatpush1.bf16.msra.mxu0 0
    %138 = vmatprep.subr.bf16.mxu0 0
    %139 = vmatpush1.bf16.msra.mxu0 0
    %140 = vmatprep.subr.bf16.mxu0 0
    %141 = vmatpush1.bf16.msra.mxu0 0
    %142 = vmatprep.mubr.bf16.mxu0 0
    %143 = vmatmul.mubr.bf16.gmra.mrb[0].mxu0 %v105
    %v144 = vpop.f32.mrb[0].mxu0
    %v145 = vadd.f32 0.0, %v144
    %v146 = vpop.f32.mrb[0].mxu0
    %v147 = vpop.f32.mrb[0].mxu0
    %v148 = vadd.f32 0.0, %v147
    %v149 = vpop.f32.mrb[0].mxu0
    %150 = vmatprep.mubr.bf16.mxu0 0
    %151 = vmatmul.mubr.bf16.gmra.mrb[0].mxu0 %v108
    %v152 = vpop.f32.mrb[0].mxu0
    %v153 = vadd.f32 0.0, %v152
    %v154 = vpop.f32.mrb[0].mxu0
    %v155 = vpop.f32.mrb[0].mxu0
    %v156 = vadd.f32 0.0, %v155
    %v157 = vpop.f32.mrb[0].mxu0
    %158 = vdwg.mxu0
    %v159 = vld [vmem:[#allocation7] sm:$0xff]
    %v160 = vld [vmem:[#allocation7 + $0x8] sm:$0xff]
    %v161 = vadd.f32 %v145, %v159
    %v162 = vadd.f32 %v148, %v160
    %v163 = vadd.f32 %v153, %v159
    %v164 = vadd.f32 %v156, %v160
    %vm165 = vcmask 261120
    %166 = vst.msk [vmem:[#allocation8] sm:$0xff] %vm165, %v161
    %167 = vst.msk [vmem:[#allocation8 + $0x8] sm:$0xff] %vm165, %v162
    %168 = vst.msk [vmem:[#allocation8 + $0x10] sm:$0xff] %vm165, %v163
    %169 = vst.msk [vmem:[#allocation8 + $0x18] sm:$0xff] %vm165, %v164
    // Predicated region
    $region26: #{tpu_custom_call.1} parent=1 // pred_check
      _
    $region27: #{tpu_custom_call.1} parent=1 // pred_check_branch
      %171 = sbr.rel (0) target = $region29
    $region28: #{tpu_custom_call.1} parent=1 // pred_region
      %s173 = ssub.s32 512, 512
      %174 = vsyncadd [#allocation4], %s173
      %s175 = sshll.u32 [#allocation8], 4
      %s176 = int_to_ptr.vmem [resolvable:$true] %s175
      %181 = dma.vmem_to_hbm [thread:$0]  %s176, 512, %s3, [#allocation4], 128, 128, 8
    $region29: #{tpu_custom_call.1} parent=1 // pred_fallthru
      _
    // Predicated region
    $region30: #{tpu_custom_call.1} parent=1 // pred_check
      _
    $region31: #{tpu_custom_call.1} parent=1 // pred_check_branch
      %183 = sbr.rel (0) target = $region33
    $region32: #{tpu_custom_call.1} parent=1 // pred_region
      %184 = dma.done [#allocation4], 512
    $region33: #{tpu_custom_call.1} parent=1 // pred_fallthru
      _
    %185 = vsyncpa [#allocation3], 1
    %186 = vsyncpa [#allocation6], 1
    %187 = vsyncpa [#allocation4], 1

</llo_original>
